<compile_context>
chip_gen: v7x
topology: tpu7x:2x2x1
jax: 0.10.0
libtpu: 0.0.40
codegen_flags: <defaults>
</compile_context>

<pallas_src>
import functools

import jax
import jax.numpy as jnp
from jax import lax
from jax.experimental import pallas as pl
from jax.experimental.pallas import tpu as pltpu


# TODO(synk): BaseSegmenter.forward is abstract (raises NotImplementedError); the
# kernel consumes "network_output" logits directly, exactly as `predict` would.
# TODO(synk): remove_too_small_contours (cv2 findContours/contourArea/fillPoly) is
# host-side OpenCV post-processing with no Pallas/TPU equivalent.

_UNROLL_CLASS_LIMIT = 16  # full unroll is the right call for C <= 8..16


def _segmenter_predict_kernel(x_ref, *out_refs, min_confidence, store_preds):
    """One grid step handles one (batch, row-tile) block of the lane-dense slab.

    x_ref:    (1, C, TR, L) logits tile (L = 128 when H*W is lane-divisible)
    pred_ref: (1, C, TR, L) thresholded softmax probabilities (only if store_preds)
    cls_ref:  (1, TR, L)    int32 argmax class ids (lane/sublane dense)
    """
    if store_preds:
        pred_ref, cls_ref = out_refs
    else:
        (cls_ref,) = out_refs
        pred_ref = None

    num_classes = x_ref.shape[1]
    need_softmax = (pred_ref is not None) or (min_confidence > 0.0)

    def load(c):
        # Per-class (TR, L) slice straight off the VMEM ref — avoids keeping a
        # C-long list of full tiles live between passes (vreg/VMEM pressure).
        return x_ref[0, c].astype(jnp.float32)

    def threshold(p):
        return jnp.where(p < min_confidence, 0.0, p) if min_confidence > 0.0 else p

    if num_classes <= _UNROLL_CLASS_LIMIT:
        # ---- small C: full trace-time unroll (per-lane VPU chains, exp on EUP) ----
        x0 = load(0)
        best_val = x0                                   # doubles as the softmax max m
        best_idx = jnp.zeros(x0.shape, jnp.int32)
        for c in range(1, num_classes):
            xc = load(c)
            take = xc > best_val                        # strict '>' keeps first index on ties
            best_val = jnp.where(take, xc, best_val)
            best_idx = jnp.where(take, jnp.int32(c), best_idx)

        if need_softmax:
            s = jnp.exp(x0 - best_val)
            for c in range(1, num_classes):
                s = s + jnp.exp(load(c) - best_val)
            inv = pl.reciprocal(s, approx=False)        # EUP, not a VALU divide chain

        if pred_ref is not None:
            for c in range(num_classes):
                # exp recomputed here (EUP slot is idle in this pass) instead of
                # pinning C exp tiles across passes.
                p_c = threshold(jnp.exp(load(c) - best_val) * inv)
                pred_ref[0, c] = p_c.astype(pred_ref.dtype)
    else:
        # ---- large C (19/21/150-class segmentation): stream classes with fori_loop
        # so bundle count / compile time stay O(1) in C.
        x0 = load(0)

        def max_body(c, carry):
            bv, bi = carry
            xc = load(c)
            take = xc > bv
            return jnp.where(take, xc, bv), jnp.where(take, c, bi)

        best_val, best_idx = lax.fori_loop(
            1, num_classes, max_body, (x0, jnp.zeros(x0.shape, jnp.int32)))

        if need_softmax:
            s = lax.fori_loop(
                0, num_classes,
                lambda c, acc: acc + jnp.exp(load(c) - best_val),
                jnp.zeros_like(best_val))
            inv = pl.reciprocal(s, approx=False)

        if pred_ref is not None:
            def store_body(c, carry):
                p_c = threshold(jnp.exp(load(c) - best_val) * inv)
                pred_ref[0, c] = p_c.astype(pred_ref.dtype)
                return carry
            lax.fori_loop(0, num_classes, store_body, 0)

    # softmax is strictly monotone, so argmax(logits) == argmax(probs).  After
    # thresholding, torch's argmax falls back to class 0 only when every prob was
    # zeroed, i.e. when the max prob (= exp(0) / s = inv) is below the threshold.
    if min_confidence > 0.0:
        best_idx = jnp.where(inv < min_confidence, 0, best_idx)

    # NOTE: class ids could be emitted as int8 (num_classes is tiny) for 4x less
    # write traffic; that wants tile_r aligned to 32 — kept int32 here for parity
    # with the torch reference.
    cls_ref[0] = best_idx                               # (TR, L) dense store


def _pick_tile_rows(rows, bytes_per_row, *, batch, align=8,
                    budget_bytes=4 * 1024 * 1024, min_grid_units=4):
    """Row-tile for the (rows, lanes) spatial slab.

    ~4 MiB/step (~8 MiB double-buffered) sits under every generation's default
    scoped VMEM (v5e 16 MiB, v6e 32 MiB, v7x 32 MiB scoped / 64 MiB physical), so
    no vmem_limit_bytes override is required.  No divisibility requirement: the
    cdiv grid masks the ragged last tile.
    """
    if rows <= align:
        return rows                                     # full-extent block is always legal
    max_rows = max(align, budget_bytes // max(bytes_per_row, 1))
    tile = min(rows, max_rows)
    tile = max(align, (tile // align) * align)

    def n_units(t):
        return batch * ((rows + t - 1) // t)

    # Occupancy: give the (parallel, parallel) grid >= min_grid_units steps so
    # v7x's two TensorCores and the pipeline always have work.
    while n_units(tile) < min_grid_units and tile > align:
        tile = max(align, ((tile // 2) // align) * align)
    return tile


def base_segmenter_predict(logits, *, min_confidence=0.0, classes_only=False,
                           pred_dtype=jnp.float32):
    """Fused softmax(dim=1) + confidence threshold + argmax for NCHW logits.

    logits: [N, C, H, W] float array (segmentation network output).
    Returns:
        if classes_only:  classes [N, 1, H, W] int32
        else:             (predictions [N, C, H, W] pred_dtype, classes [N, 1, H, W] int32)
    """
    N, C, H, W = logits.shape
    HW = H * W

    # Lane-dense spatial view: map the spatial dims onto a (rows, 128) slab when
    # possible so the lane axis is fully utilized and stores are unmasked.
    if HW % 128 == 0:
        R, L = HW // 128, 128
    else:
        R, L = H, W  # TODO(synk): pad odd spatial sizes to a lane multiple if needed.
    x = logits.reshape(N, C, R, L)

    in_item = jnp.dtype(logits.dtype).itemsize
    cls_item = 4
    pred_item = 0 if classes_only else jnp.dtype(pred_dtype).itemsize
    itemsizes = [in_item, cls_item] + ([] if classes_only else [jnp.dtype(pred_dtype).itemsize])
    align = max(32 // i for i in itemsizes)             # f32/int32 -> 8, bf16 -> 16, int8 -> 32

    bytes_per_row = (C * in_item + C * pred_item + cls_item) * L
    tile_r = _pick_tile_rows(R, bytes_per_row, batch=N, align=align)
    grid = (N, pl.cdiv(R, tile_r))

    kernel = functools.partial(_segmenter_predict_kernel,
                               min_confidence=float(min_confidence),
                               store_preds=not classes_only)

    in_spec = pl.BlockSpec((1, C, tile_r, L), lambda n, r: (n, 0, r, 0))
    cls_spec = pl.BlockSpec((1, tile_r, L), lambda n, r: (n, r, 0))
    cls_shape = jax.ShapeDtypeStruct((N, R, L), jnp.int32)

    if classes_only:
        out_shape = cls_shape
        out_specs = cls_spec
    else:
        out_shape = (jax.ShapeDtypeStruct((N, C, R, L), pred_dtype), cls_shape)
        out_specs = (pl.BlockSpec((1, C, tile_r, L), lambda n, r: (n, 0, r, 0)), cls_spec)

    result = pl.pallas_call(
        kernel,
        out_shape=out_shape,
        grid=grid,
        in_specs=[in_spec],
        out_specs=out_specs,
        compiler_params=pltpu.CompilerParams(
            # Both axes are independent work -> both parallel (lets v7x shard the
            # (n, row_tile) grid across its two TensorCores even for small N).
            dimension_semantics=("parallel", "parallel"),
        ),
    )(x)

    if classes_only:
        return result.reshape(N, 1, H, W)
    preds, classes = result
    return preds.reshape(N, C, H, W), classes.reshape(N, 1, H, W)


if __name__ == "__main__":
    # Small, deterministic example consistent with a segmentation forward pass:
    # batch=2, num classes (channels)=4, spatial=16x16.
    key = jax.random.PRNGKey(0)
    N, C, H, W = 2, 4, 16, 16
    logits = jax.random.normal(key, (N, C, H, W), dtype=jnp.float32)

    min_confidence = 0.1  # BaseSegmenter(min_confidence=0.1)

    # Full `predict` path: thresholded softmax + classes.
    preds, classes = base_segmenter_predict(logits, min_confidence=min_confidence)
    preds = jax.block_until_ready(preds)
    classes = jax.block_until_ready(classes)

    # `predict_classes` fast path: skips the probability writeback entirely.
    classes_fast = jax.block_until_ready(
        base_segmenter_predict(logits, min_confidence=min_confidence, classes_only=True))

    # Narrow-output variant: bf16 probability storage (arithmetic stays f32).
    preds_bf16, classes_bf16 = base_segmenter_predict(
        logits, min_confidence=min_confidence, pred_dtype=jnp.bfloat16)
    preds_bf16 = jax.block_until_ready(preds_bf16)
    classes_bf16 = jax.block_until_ready(classes_bf16)

    # Pure-JAX reference (softmax over channel axis + threshold + argmax).
    ref_soft = jax.nn.softmax(logits, axis=1)
    ref_pred = jnp.where(ref_soft < min_confidence, 0.0, ref_soft)
    ref_cls = jnp.argmax(ref_pred, axis=1, keepdims=True).astype(jnp.int32)

    assert preds.shape == (N, C, H, W)
    assert classes.shape == (N, 1, H, W)
    assert jnp.allclose(preds, ref_pred, atol=1e-5, rtol=1e-5)
    assert jnp.array_equal(classes, ref_cls)
    assert jnp.array_equal(classes_fast, ref_cls)
    assert jnp.array_equal(classes_bf16, ref_cls)
    assert jnp.allclose(preds_bf16.astype(jnp.float32), ref_pred, atol=1e-2, rtol=1e-2)

    print("KERNEL_OK")
</pallas_src>

<mosaic_0001>
module attributes {stable_mosaic.version = 11 : i64} {
  func.func @_segmenter_predict_kernel(%arg0: i32, %arg1: i32, %arg2: memref<1x4x2x128xf32, #tpu.memory_space<vmem>>, %arg3: memref<1x4x2x128xf32, #tpu.memory_space<vmem>>, %arg4: memref<1x2x128xi32, #tpu.memory_space<vmem>>) attributes {dimension_semantics = [#tpu.dimension_semantics<parallel>, #tpu.dimension_semantics<parallel>], iteration_bounds = array<i64: 2, 1>, scalar_prefetch = 0 : i64, scratch_operands = 0 : i64, tpu.core_type = #tpu.core_type<tc>, window_params = [{transform_indices = @transform_0, window_bounds = array<i64: 1, 4, 2, 128>}, {transform_indices = @transform_1, window_bounds = array<i64: 1, 4, 2, 128>}, {transform_indices = @transform_2, window_bounds = array<i64: 1, 2, 128>}]} {
    %c0 = arith.constant 0 : index
    %c0_0 = arith.constant 0 : index
    %c0_1 = arith.constant 0 : index
    %c0_2 = arith.constant 0 : index
    %0 = vector.load %arg2[%c0, %c0_0, %c0_1, %c0_2] : memref<1x4x2x128xf32, #tpu.memory_space<vmem>>, vector<1x1x2x128xf32>
    %1 = vector.shape_cast %0 : vector<1x1x2x128xf32> to vector<2x128xf32>
    %c0_i32 = arith.constant 0 : i32
    %2 = vector.broadcast %c0_i32 : i32 to vector<2x128xi32>
    %c0_3 = arith.constant 0 : index
    %c1 = arith.constant 1 : index
    %c0_4 = arith.constant 0 : index
    %c0_5 = arith.constant 0 : index
    %3 = vector.load %arg2[%c0_3, %c1, %c0_4, %c0_5] : memref<1x4x2x128xf32, #tpu.memory_space<vmem>>, vector<1x1x2x128xf32>
    %4 = vector.shape_cast %3 : vector<1x1x2x128xf32> to vector<2x128xf32>
    %5 = arith.cmpf ogt, %4, %1 : vector<2x128xf32>
    %6 = arith.select %5, %4, %1 : vector<2x128xi1>, vector<2x128xf32>
    %c1_i32 = arith.constant 1 : i32
    %7 = vector.broadcast %c1_i32 : i32 to vector<2x128xi32>
    %8 = arith.select %5, %7, %2 : vector<2x128xi1>, vector<2x128xi32>
    %c0_6 = arith.constant 0 : index
    %c2 = arith.constant 2 : index
    %c0_7 = arith.constant 0 : index
    %c0_8 = arith.constant 0 : index
    %9 = vector.load %arg2[%c0_6, %c2, %c0_7, %c0_8] : memref<1x4x2x128xf32, #tpu.memory_space<vmem>>, vector<1x1x2x128xf32>
    %10 = vector.shape_cast %9 : vector<1x1x2x128xf32> to vector<2x128xf32>
    %11 = arith.cmpf ogt, %10, %6 : vector<2x128xf32>
    %12 = arith.select %11, %10, %6 : vector<2x128xi1>, vector<2x128xf32>
    %c2_i32 = arith.constant 2 : i32
    %13 = vector.broadcast %c2_i32 : i32 to vector<2x128xi32>
    %14 = arith.select %11, %13, %8 : vector<2x128xi1>, vector<2x128xi32>
    %c0_9 = arith.constant 0 : index
    %c3 = arith.constant 3 : index
    %c0_10 = arith.constant 0 : index
    %c0_11 = arith.constant 0 : index
    %15 = vector.load %arg2[%c0_9, %c3, %c0_10, %c0_11] : memref<1x4x2x128xf32, #tpu.memory_space<vmem>>, vector<1x1x2x128xf32>
    %16 = vector.shape_cast %15 : vector<1x1x2x128xf32> to vector<2x128xf32>
    %17 = arith.cmpf ogt, %16, %12 : vector<2x128xf32>
    %18 = arith.select %17, %16, %12 : vector<2x128xi1>, vector<2x128xf32>
    %c3_i32 = arith.constant 3 : i32
    %19 = vector.broadcast %c3_i32 : i32 to vector<2x128xi32>
    %20 = arith.select %17, %19, %14 : vector<2x128xi1>, vector<2x128xi32>
    %21 = arith.subf %1, %18 : vector<2x128xf32>
    %22 = math.exp %21 : vector<2x128xf32>
    %c0_12 = arith.constant 0 : index
    %c1_13 = arith.constant 1 : index
    %c0_14 = arith.constant 0 : index
    %c0_15 = arith.constant 0 : index
    %23 = vector.load %arg2[%c0_12, %c1_13, %c0_14, %c0_15] : memref<1x4x2x128xf32, #tpu.memory_space<vmem>>, vector<1x1x2x128xf32>
    %24 = vector.shape_cast %23 : vector<1x1x2x128xf32> to vector<2x128xf32>
    %25 = arith.subf %24, %18 : vector<2x128xf32>
    %26 = math.exp %25 : vector<2x128xf32>
    %27 = arith.addf %22, %26 : vector<2x128xf32>
    %c0_16 = arith.constant 0 : index
    %c2_17 = arith.constant 2 : index
    %c0_18 = arith.constant 0 : index
    %c0_19 = arith.constant 0 : index
    %28 = vector.load %arg2[%c0_16, %c2_17, %c0_18, %c0_19] : memref<1x4x2x128xf32, #tpu.memory_space<vmem>>, vector<1x1x2x128xf32>
    %29 = vector.shape_cast %28 : vector<1x1x2x128xf32> to vector<2x128xf32>
    %30 = arith.subf %29, %18 : vector<2x128xf32>
    %31 = math.exp %30 : vector<2x128xf32>
    %32 = arith.addf %27, %31 : vector<2x128xf32>
    %c0_20 = arith.constant 0 : index
    %c3_21 = arith.constant 3 : index
    %c0_22 = arith.constant 0 : index
    %c0_23 = arith.constant 0 : index
    %33 = vector.load %arg2[%c0_20, %c3_21, %c0_22, %c0_23] : memref<1x4x2x128xf32, #tpu.memory_space<vmem>>, vector<1x1x2x128xf32>
    %34 = vector.shape_cast %33 : vector<1x1x2x128xf32> to vector<2x128xf32>
    %35 = arith.subf %34, %18 : vector<2x128xf32>
    %36 = math.exp %35 : vector<2x128xf32>
    %37 = arith.addf %32, %36 : vector<2x128xf32>
    %38 = tpu.reciprocal %37 : vector<2x128xf32> -> vector<2x128xf32>
    %c0_24 = arith.constant 0 : index
    %c0_25 = arith.constant 0 : index
    %c0_26 = arith.constant 0 : index
    %c0_27 = arith.constant 0 : index
    %39 = vector.load %arg2[%c0_24, %c0_25, %c0_26, %c0_27] : memref<1x4x2x128xf32, #tpu.memory_space<vmem>>, vector<1x1x2x128xf32>
    %40 = vector.shape_cast %39 : vector<1x1x2x128xf32> to vector<2x128xf32>
    %41 = arith.subf %40, %18 : vector<2x128xf32>
    %42 = math.exp %41 : vector<2x128xf32>
    %43 = arith.mulf %42, %38 : vector<2x128xf32>
    %cst = arith.constant 1.000000e-01 : f32
    %44 = vector.broadcast %cst : f32 to vector<2x128xf32>
    %45 = arith.cmpf olt, %43, %44 : vector<2x128xf32>
    %cst_28 = arith.constant 0.000000e+00 : f32
    %46 = vector.broadcast %cst_28 : f32 to vector<2x128xf32>
    %47 = arith.select %45, %46, %43 : vector<2x128xi1>, vector<2x128xf32>
    %c0_29 = arith.constant 0 : index
    %c0_30 = arith.constant 0 : index
    %c0_31 = arith.constant 0 : index
    %c0_32 = arith.constant 0 : index
    %48 = vector.load %arg3[%c0_29, %c0_30, %c0_31, %c0_32] : memref<1x4x2x128xf32, #tpu.memory_space<vmem>>, vector<1x1x2x128xf32>
    %49 = vector.shape_cast %48 : vector<1x1x2x128xf32> to vector<2x128xf32>
    %50 = vector.shape_cast %47 : vector<2x128xf32> to vector<1x1x2x128xf32>
    tpu.vector_store %arg3[%c0_29, %c0_30, %c0_31, %c0_32], %50 {strides = array<i32>} : memref<1x4x2x128xf32, #tpu.memory_space<vmem>>, vector<1x1x2x128xf32>,
    %c0_33 = arith.constant 0 : index
    %c1_34 = arith.constant 1 : index
    %c0_35 = arith.constant 0 : index
    %c0_36 = arith.constant 0 : index
    %51 = vector.load %arg2[%c0_33, %c1_34, %c0_35, %c0_36] : memref<1x4x2x128xf32, #tpu.memory_space<vmem>>, vector<1x1x2x128xf32>
    %52 = vector.shape_cast %51 : vector<1x1x2x128xf32> to vector<2x128xf32>
    %53 = arith.subf %52, %18 : vector<2x128xf32>
    %54 = math.exp %53 : vector<2x128xf32>
    %55 = arith.mulf %54, %38 : vector<2x128xf32>
    %cst_37 = arith.constant 1.000000e-01 : f32
    %56 = vector.broadcast %cst_37 : f32 to vector<2x128xf32>
    %57 = arith.cmpf olt, %55, %56 : vector<2x128xf32>
    %cst_38 = arith.constant 0.000000e+00 : f32
    %58 = vector.broadcast %cst_38 : f32 to vector<2x128xf32>
    %59 = arith.select %57, %58, %55 : vector<2x128xi1>, vector<2x128xf32>
    %c0_39 = arith.constant 0 : index
    %c1_40 = arith.constant 1 : index
    %c0_41 = arith.constant 0 : index
    %c0_42 = arith.constant 0 : index
    %60 = vector.load %arg3[%c0_39, %c1_40, %c0_41, %c0_42] : memref<1x4x2x128xf32, #tpu.memory_space<vmem>>, vector<1x1x2x128xf32>
    %61 = vector.shape_cast %60 : vector<1x1x2x128xf32> to vector<2x128xf32>
    %62 = vector.shape_cast %59 : vector<2x128xf32> to vector<1x1x2x128xf32>
    tpu.vector_store %arg3[%c0_39, %c1_40, %c0_41, %c0_42], %62 {strides = array<i32>} : memref<1x4x2x128xf32, #tpu.memory_space<vmem>>, vector<1x1x2x128xf32>,
    %c0_43 = arith.constant 0 : index
    %c2_44 = arith.constant 2 : index
    %c0_45 = arith.constant 0 : index
    %c0_46 = arith.constant 0 : index
    %63 = vector.load %arg2[%c0_43, %c2_44, %c0_45, %c0_46] : memref<1x4x2x128xf32, #tpu.memory_space<vmem>>, vector<1x1x2x128xf32>
    %64 = vector.shape_cast %63 : vector<1x1x2x128xf32> to vector<2x128xf32>
    %65 = arith.subf %64, %18 : vector<2x128xf32>
    %66 = math.exp %65 : vector<2x128xf32>
    %67 = arith.mulf %66, %38 : vector<2x128xf32>
    %cst_47 = arith.constant 1.000000e-01 : f32
    %68 = vector.broadcast %cst_47 : f32 to vector<2x128xf32>
    %69 = arith.cmpf olt, %67, %68 : vector<2x128xf32>
    %cst_48 = arith.constant 0.000000e+00 : f32
    %70 = vector.broadcast %cst_48 : f32 to vector<2x128xf32>
    %71 = arith.select %69, %70, %67 : vector<2x128xi1>, vector<2x128xf32>
    %c0_49 = arith.constant 0 : index
    %c2_50 = arith.constant 2 : index
    %c0_51 = arith.constant 0 : index
    %c0_52 = arith.constant 0 : index
    %72 = vector.load %arg3[%c0_49, %c2_50, %c0_51, %c0_52] : memref<1x4x2x128xf32, #tpu.memory_space<vmem>>, vector<1x1x2x128xf32>
    %73 = vector.shape_cast %72 : vector<1x1x2x128xf32> to vector<2x128xf32>
    %74 = vector.shape_cast %71 : vector<2x128xf32> to vector<1x1x2x128xf32>
    tpu.vector_store %arg3[%c0_49, %c2_50, %c0_51, %c0_52], %74 {strides = array<i32>} : memref<1x4x2x128xf32, #tpu.memory_space<vmem>>, vector<1x1x2x128xf32>,
    %c0_53 = arith.constant 0 : index
    %c3_54 = arith.constant 3 : index
    %c0_55 = arith.constant 0 : index
    %c0_56 = arith.constant 0 : index
    %75 = vector.load %arg2[%c0_53, %c3_54, %c0_55, %c0_56] : memref<1x4x2x128xf32, #tpu.memory_space<vmem>>, vector<1x1x2x128xf32>
    %76 = vector.shape_cast %75 : vector<1x1x2x128xf32> to vector<2x128xf32>
    %77 = arith.subf %76, %18 : vector<2x128xf32>
    %78 = math.exp %77 : vector<2x128xf32>
    %79 = arith.mulf %78, %38 : vector<2x128xf32>
    %cst_57 = arith.constant 1.000000e-01 : f32
    %80 = vector.broadcast %cst_57 : f32 to vector<2x128xf32>
    %81 = arith.cmpf olt, %79, %80 : vector<2x128xf32>
    %cst_58 = arith.constant 0.000000e+00 : f32
    %82 = vector.broadcast %cst_58 : f32 to vector<2x128xf32>
    %83 = arith.select %81, %82, %79 : vector<2x128xi1>, vector<2x128xf32>
    %c0_59 = arith.constant 0 : index
    %c3_60 = arith.constant 3 : index
    %c0_61 = arith.constant 0 : index
    %c0_62 = arith.constant 0 : index
    %84 = vector.load %arg3[%c0_59, %c3_60, %c0_61, %c0_62] : memref<1x4x2x128xf32, #tpu.memory_space<vmem>>, vector<1x1x2x128xf32>
    %85 = vector.shape_cast %84 : vector<1x1x2x128xf32> to vector<2x128xf32>
    %86 = vector.shape_cast %83 : vector<2x128xf32> to vector<1x1x2x128xf32>
    tpu.vector_store %arg3[%c0_59, %c3_60, %c0_61, %c0_62], %86 {strides = array<i32>} : memref<1x4x2x128xf32, #tpu.memory_space<vmem>>, vector<1x1x2x128xf32>,
    %cst_63 = arith.constant 1.000000e-01 : f32
    %87 = vector.broadcast %cst_63 : f32 to vector<2x128xf32>
    %88 = arith.cmpf olt, %38, %87 : vector<2x128xf32>
    %c0_i32_64 = arith.constant 0 : i32
    %89 = vector.broadcast %c0_i32_64 : i32 to vector<2x128xi32>
    %90 = arith.select %88, %89, %20 : vector<2x128xi1>, vector<2x128xi32>
    %c0_65 = arith.constant 0 : index
    %c0_66 = arith.constant 0 : index
    %c0_67 = arith.constant 0 : index
    %91 = vector.load %arg4[%c0_65, %c0_66, %c0_67] : memref<1x2x128xi32, #tpu.memory_space<vmem>>, vector<1x2x128xi32>
    %92 = vector.shape_cast %91 : vector<1x2x128xi32> to vector<2x128xi32>
    %93 = vector.shape_cast %90 : vector<2x128xi32> to vector<1x2x128xi32>
    tpu.vector_store %arg4[%c0_65, %c0_66, %c0_67], %93 {strides = array<i32>} : memref<1x2x128xi32, #tpu.memory_space<vmem>>, vector<1x2x128xi32>,
    return
  }
  func.func @transform_0(%arg0: i32, %arg1: i32) -> (i32, i32, i32, i32) {
    %c0_i32 = arith.constant 0 : i32
    %c0_i32_0 = arith.constant 0 : i32
    %c0_i32_1 = arith.constant 0 : i32
    return %arg0, %c0_i32, %arg1, %c0_i32_0 : i32, i32, i32, i32
  }
  func.func @transform_1(%arg0: i32, %arg1: i32) -> (i32, i32, i32, i32) {
    %c0_i32 = arith.constant 0 : i32
    %c0_i32_0 = arith.constant 0 : i32
    %c0_i32_1 = arith.constant 0 : i32
    return %arg0, %c0_i32, %arg1, %c0_i32_0 : i32, i32, i32, i32
  }
  func.func @transform_2(%arg0: i32, %arg1: i32) -> (i32, i32, i32) {
    %c0_i32 = arith.constant 0 : i32
    %c0_i32_0 = arith.constant 0 : i32
    return %arg0, %arg1, %c0_i32 : i32, i32, i32
  }
}

</mosaic_0001>

<llo_original>
// kernel: tpu_custom_call.1
$region0: #{tpu_custom_call.1}
  #allocation0 [shape = 'u32[]', space=smem, size = 0x4, offset = 0x4, fixed_abs, tag = 'smem constant byte address 0x4 - core index']
  #allocation1 [shape = 'u32[144,128]{1,0:T(1,128)}', space=vmem, size = 0x12000, scoped, tag = 'internal scratch']
  %s0 = inlined_call_operand.hbm [shape: f32[2,4,2,128], index: 0, kind: input, shape index: {}]
  %s1 = inlined_call_operand.hbm [shape: f32[2,4,2,128], index: 1, kind: output, shape index: {0}]
  %s2 = inlined_call_operand.hbm [shape: s32[2,2,128], index: 2, kind: output, shape index: {1}]
  %3 = xla_tuple %s1, %s2
  %s4 = sld [smem:[#allocation0]]
  $region49: #{tpu_custom_call.1} parent=0
    _
  %s6 = ssub.s32 1, %s4
  %s7 = scalar_select 0, %s6, %s4
  $region1: #{tpu_custom_call.1} parent=0
    #allocation2 [shape = 'u8[8192]{0}', space=vmem, size = 0x2000, scoped, tag = 'input window, operand 0']
    #allocation3 [shape = 's32[2]{0}', space=sflag, size = 0x8, scoped, tag = 'scoped memory for tpu_custom_call.1']
    #allocation4 [shape = 's32[2]{0}', space=sflag, size = 0x8, scoped, tag = 'scoped memory for tpu_custom_call.1']
    #allocation5 [shape = 'u8[8192]{0}', space=vmem, size = 0x2000, scoped, tag = 'output window, operand 0']
    #allocation6 [shape = 'u8[2048]{0}', space=vmem, size = 0x800, scoped, tag = 'output window, operand 1']
    #allocation7 [shape = 's32[2]{0}', space=sflag, size = 0x8, scoped, tag = 'scoped memory for tpu_custom_call.1']
    %8 = vsyncpa [#allocation3], 0
    %s9 = scalar_lea.sflag [#allocation3], 1
    %10 = vsyncpa %s9, 0
    %11 = vsyncpa [#allocation4], 0
    %s12 = scalar_lea.sflag [#allocation4], 1
    %13 = vsyncpa %s12, 0
    %14 = vsyncpa [#allocation7], 0
    %s15 = scalar_lea.sflag [#allocation7], 1
    %16 = vsyncpa %s15, 0
    loop: start=0, step=1, limit=4
    $region2: #{tpu_custom_call.1} parent=1 // loop_pre_header
      _
    $region3: #{tpu_custom_call.1} parent=1 // loop_header
      %s18 = sphi 0, %s22
      %p19 = scmp.ge.s32.totalorder %s18, 4
      %s25 = sphi 0, %s37
      %s26 = sphi 0, %s33
      %s27 = sphi 0, %s25
      %s28 = sphi 0, %s26
      %s29 = sphi 0, %s27
      %s30 = sphi 0, %s28
      %s42 = sphi 0, %s44
      %s45 = sphi 0, %s42
      %s46 = sphi 0, %s45
      %s62 = sphi 0, %s46
      %s70 = sphi 0, %s72
      %s73 = sphi 0, %s70
      %s74 = sphi 0, %s73
      %s90 = sphi 0, %s74
      %s98 = sphi 0, %s100
      %s101 = sphi 0, %s98
      %s102 = sphi 0, %s101
      %s118 = sphi 0, %s102
    $region4: #{tpu_custom_call.1} parent=1 // loop_header_branch
      %21 = sbr.rel (%p19) target = $region8
    $region5: #{tpu_custom_call.1} parent=1 // loop_body
      %s23 = ssub.s32 %s18, 1
      %s24 = ssub.s32 %s18, 2
      %s31 = sadd.s32 1, %s26
      %p32 = scmp.ge.s32.totalorder %s31, 1
      %s33 = scalar_select %p32, 0, %s31
      %s34 = sadd.s32 1, %s25
      %s35 = scalar_select %p32, %s34, %s25
      %p36 = scmp.ge.s32.totalorder %s35, 2
      %s37 = scalar_select %p36, 0, %s35
      %s38 = ssub.s32 %s25, %s37
      %s39 = ssub.s32 %s26, %s33
      %s40 = sor.u32 %s38, %s39
      %p41 = scmp.eq.s32.totalorder %s40, 0
      %s43 = sadd.s32 %s42, 1
      %s44 = scalar_select %p41, %s42, %s43
      %p47 = pneg %p41
      %p48 = scmp.eq.s32.totalorder %s18, 1
      %p49 = por %p47, %p48
      %p50 = scmp.ne.s32.totalorder %s42, %s45
      %p51 = scmp.eq.s32.totalorder %s18, 0
      %p52 = por %p50, %p51
      %p53 = scmp.ne.s32.totalorder %s42, %s45
      %p54 = scmp.eq.s32.totalorder %s23, 1
      %p55 = por %p53, %p54
      %p56 = scmp.ne.s32.totalorder %s45, %s46
      %p57 = scmp.eq.s32.totalorder %s23, 0
      %p58 = por %p56, %p57
      %p59 = scmp.ne.s32.totalorder %s45, %s46
      %p60 = scmp.eq.s32.totalorder %s24, 1
      %p61 = por %p59, %p60
      %p63 = scmp.ne.s32.totalorder %s46, %s62
      %p64 = scmp.eq.s32.totalorder %s24, 0
      %p65 = por %p63, %p64
      %s66 = ssub.s32 %s25, %s37
      %s67 = ssub.s32 %s26, %s33
      %s68 = sor.u32 %s66, %s67
      %p69 = scmp.eq.s32.totalorder %s68, 0
      %s71 = sadd.s32 %s70, 1
      %s72 = scalar_select %p69, %s70, %s71
      %p75 = pneg %p69
      %p76 = scmp.eq.s32.totalorder %s18, 1
      %p77 = por %p75, %p76
      %p78 = scmp.ne.s32.totalorder %s70, %s73
      %p79 = scmp.eq.s32.totalorder %s18, 0
      %p80 = por %p78, %p79
      %p81 = scmp.ne.s32.totalorder %s70, %s73
      %p82 = scmp.eq.s32.totalorder %s23, 1
      %p83 = por %p81, %p82
      %p84 = scmp.ne.s32.totalorder %s73, %s74
      %p85 = scmp.eq.s32.totalorder %s23, 0
      %p86 = por %p84, %p85
      %p87 = scmp.ne.s32.totalorder %s73, %s74
      %p88 = scmp.eq.s32.totalorder %s24, 1
      %p89 = por %p87, %p88
      %p91 = scmp.ne.s32.totalorder %s74, %s90
      %p92 = scmp.eq.s32.totalorder %s24, 0
      %p93 = por %p91, %p92
      %s94 = ssub.s32 %s25, %s37
      %s95 = ssub.s32 %s26, %s33
      %s96 = sor.u32 %s94, %s95
      %p97 = scmp.eq.s32.totalorder %s96, 0
      %s99 = sadd.s32 %s98, 1
      %s100 = scalar_select %p97, %s98, %s99
      %p103 = pneg %p97
      %p104 = scmp.eq.s32.totalorder %s18, 1
      %p105 = por %p103, %p104
      %p106 = scmp.ne.s32.totalorder %s98, %s101
      %p107 = scmp.eq.s32.totalorder %s18, 0
      %p108 = por %p106, %p107
      %p109 = scmp.ne.s32.totalorder %s98, %s101
      %p110 = scmp.eq.s32.totalorder %s23, 1
      %p111 = por %p109, %p110
      %p112 = scmp.ne.s32.totalorder %s101, %s102
      %p113 = scmp.eq.s32.totalorder %s23, 0
      %p114 = por %p112, %p113
      %p115 = scmp.ne.s32.totalorder %s101, %s102
      %p116 = scmp.eq.s32.totalorder %s24, 1
      %p117 = por %p115, %p116
      %p119 = scmp.ne.s32.totalorder %s102, %s118
      %p120 = scmp.eq.s32.totalorder %s24, 0
      %p121 = por %p119, %p120
      %p122 = scmp.le.s32.totalorder 1, %s18
      %p123 = scmp.lt.s32.totalorder %s18, 3
      %p124 = pnand %p122, %p123
      %p125 = pneg %p124
      // Predicated region
      $region9: #{tpu_custom_call.1} parent=5 // pred_check
        _
      $region10: #{tpu_custom_call.1} parent=5 // pred_check_branch
        %127 = sbr.rel (%p124) target = $region12
      $region11: #{tpu_custom_call.1} parent=5 // pred_region
        %s128 = ssub.s32 %s18, 1
      $region12: #{tpu_custom_call.1} parent=5 // pred_fallthru
        _
      %p129 = scmp.lt.s32.totalorder %s18, 2
      // Predicated region
      $region13: #{tpu_custom_call.1} parent=5 // pred_check
        %p130 = pneg %p129
      $region14: #{tpu_custom_call.1} parent=5 // pred_check_branch
        %132 = sbr.rel (%p130) target = $region16
      $region15: #{tpu_custom_call.1} parent=5 // pred_region
        // Predicated region
        $region17: #{tpu_custom_call.1} parent=15 // pred_check
          %p133 = pneg %p52
        $region18: #{tpu_custom_call.1} parent=15 // pred_check_branch
          %135 = sbr.rel (%p133) target = $region20
        $region19: #{tpu_custom_call.1} parent=15 // pred_region
          %s136 = sand.u32 %s42, 1
          %s137 = scalar_lea.sflag [#allocation3], %s136
          %s138 = sand.u32 %s42, 1
          %s139 = smul.addr %s138, 8
          %s140 = scalar_lea.vmem [#allocation2], %s139
          %s142 = ssub.s32 128, 128
          %143 = vsyncadd %s137, %s142
          %s144 = smul.addr %s25, 4
          %s145 = sadd.s32 %s26, %s144
          %s146 = smul.addr %s145, 32
          %s147 = scalar_lea.hbm %s0, %s146
          %s148 = sshll.u32 %s140, 4
          %s149 = int_to_ptr.vmem [resolvable:$true] %s148
          %154 = dma.hbm_to_vmem [thread:$0]  %s147, 128, %s149, %s137, 32, 32, 2
        $region20: #{tpu_custom_call.1} parent=15 // pred_fallthru
          _
      $region16: #{tpu_custom_call.1} parent=5 // pred_fallthru
        _
      %p155 = scmp.le.s32.totalorder 1, %s18
      %p156 = scmp.lt.s32.totalorder %s18, 3
      %p157 = pnand %p155, %p156
      %p158 = pneg %p157
      // Predicated region
      $region21: #{tpu_custom_call.1} parent=5 // pred_check
        _
      $region22: #{tpu_custom_call.1} parent=5 // pred_check_branch
        %160 = sbr.rel (%p157) target = $region24
      $region23: #{tpu_custom_call.1} parent=5 // pred_region
        %s161 = ssub.s32 %s18, 1
        %s162 = sand.u32 %s45, 1
        %s163 = scalar_lea.sflag [#allocation3], %s162
        %s164 = sand.u32 %s45, 1
        %s165 = smul.addr %s164, 8
        %s166 = scalar_lea.vmem [#allocation2], %s165
        // Predicated region
        $region25: #{tpu_custom_call.1} parent=23 // pred_check
          %p167 = pneg %p58
        $region26: #{tpu_custom_call.1} parent=23 // pred_check_branch
          %169 = sbr.rel (%p167) target = $region28
        $region27: #{tpu_custom_call.1} parent=23 // pred_region
          %170 = dma.done %s163, 128
        $region28: #{tpu_custom_call.1} parent=23 // pred_fallthru
          _
        %s171 = sand.u32 %s45, 1
        %s172 = scalar_lea.sflag [#allocation3], %s171
        %s173 = sand.u32 %s45, 1
        %s174 = smul.addr %s173, 8
        %s175 = scalar_lea.vmem [#allocation2], %s174
        %p176 = pneg %p58
        %p177 = pneg %p55
        %p178 = pneg %p86
        %p179 = pneg %p83
        %s180 = sand.u32 %s73, 1
        %s181 = scalar_lea.sflag [#allocation4], %s180
        %s182 = sand.u32 %s73, 1
        %s183 = smul.addr %s182, 8
        %s184 = scalar_lea.vmem [#allocation5], %s183
        %p185 = pneg %p114
        %p186 = pneg %p111
        %s187 = sand.u32 %s101, 1
        %s188 = scalar_lea.sflag [#allocation7], %s187
        %s189 = sand.u32 %s101, 1
        %s190 = smul.addr %s189, 2
        %s191 = scalar_lea.vmem [#allocation6], %s190
        %v192 = vld [vmem:[%s166] sm:$0x3]
        %s193 = scalar_lea.vmem %s166, 2 [#allocation2]
        %v194 = vld [vmem:[%s193] sm:$0x3]
        %vm195 = vcmp.gt.f32.partialorder %v194, %v192
        %v196 = vsel %vm195, %v194, %v192
        %v197 = vsel %vm195, 1, 0
        %s198 = scalar_lea.vmem %s166, 4 [#allocation2]
        %v199 = vld [vmem:[%s198] sm:$0x3]
        %vm200 = vcmp.gt.f32.partialorder %v199, %v196
        %v201 = vsel %vm200, %v199, %v196
        %v202 = vsel %vm200, 2, %v197
        %s203 = scalar_lea.vmem %s166, 6 [#allocation2]
        %v204 = vld [vmem:[%s203] sm:$0x3]
        %vm205 = vcmp.gt.f32.partialorder %v204, %v201
        %v206 = vsel %vm205, %v204, %v201
        %v207 = vsel %vm205, 3, %v202
        %v208 = vsub.f32 %v192, %v206
        %v209 = vmul.f32 %v208, 1.442695
        %v210 = vpow.pop %v209
        %v211 = vsub.f32 %v194, %v206
        %v212 = vmul.f32 %v211, 1.442695
        %v213 = vpow.pop %v212
        %v214 = vadd.f32 %v210, %v213
        %v215 = vsub.f32 %v199, %v206
        %v216 = vmul.f32 %v215, 1.442695
        %v217 = vpow.pop %v216
        %v218 = vadd.f32 %v214, %v217
        %v219 = vsub.f32 %v204, %v206
        %v220 = vmul.f32 %v219, 1.442695
        %v221 = vpow.pop %v220
        %v222 = vadd.f32 %v218, %v221
        %v223 = vrcp.pop %v222
        %v224 = vmul.f32 %v210, %v223
        %vm225 = vcmp.lt.f32.partialorder %v224, 0.1
        %v226 = vsel %vm225, 0.0, %v224
        %227 = vst [vmem:[%s184] sm:$0x3] %v226
        %v228 = vld [vmem:[%s193] sm:$0x3]
        %v229 = vsub.f32 %v228, %v206
        %v230 = vmul.f32 %v229, 1.442695
        %v231 = vpow.pop %v230
        %v232 = vmul.f32 %v231, %v223
        %vm233 = vcmp.lt.f32.partialorder %v232, 0.1
        %v234 = vsel %vm233, 0.0, %v232
        %s235 = scalar_lea.vmem %s184, 2 [#allocation5]
        %236 = vst [vmem:[%s235] sm:$0x3] %v234
        %v237 = vld [vmem:[%s198] sm:$0x3]
        %v238 = vsub.f32 %v237, %v206
        %v239 = vmul.f32 %v238, 1.442695
        %v240 = vpow.pop %v239
        %v241 = vmul.f32 %v240, %v223
        %vm242 = vcmp.lt.f32.partialorder %v241, 0.1
        %v243 = vsel %vm242, 0.0, %v241
        %s244 = scalar_lea.vmem %s184, 4 [#allocation5]
        %245 = vst [vmem:[%s244] sm:$0x3] %v243
        %v246 = vld [vmem:[%s203] sm:$0x3]
        %v247 = vsub.f32 %v246, %v206
        %v248 = vmul.f32 %v247, 1.442695
        %v249 = vpow.pop %v248
        %v250 = vmul.f32 %v249, %v223
        %vm251 = vcmp.lt.f32.partialorder %v250, 0.1
        %v252 = vsel %vm251, 0.0, %v250
        %s253 = scalar_lea.vmem %s184, 6 [#allocation5]
        %254 = vst [vmem:[%s253] sm:$0x3] %v252
        %vm255 = vcmp.lt.f32.partialorder %v223, 0.1
        %v256 = vsel %vm255, 0, %v207
        %257 = vst [vmem:[%s191] sm:$0x3] %v256
        %s258 = sand.u32 %s73, 1
        %s259 = scalar_lea.sflag [#allocation4], %s258
        %s260 = sand.u32 %s73, 1
        %s261 = smul.addr %s260, 8
        %s262 = scalar_lea.vmem [#allocation5], %s261
        %s263 = sand.u32 %s101, 1
        %s264 = scalar_lea.sflag [#allocation7], %s263
        %s265 = sand.u32 %s101, 1
        %s266 = smul.addr %s265, 2
        %s267 = scalar_lea.vmem [#allocation6], %s266
        // Predicated region
        $region29: #{tpu_custom_call.1} parent=23 // pred_check
          %p268 = pneg %p83
        $region30: #{tpu_custom_call.1} parent=23 // pred_check_branch
          %270 = sbr.rel (%p268) target = $region32
        $region31: #{tpu_custom_call.1} parent=23 // pred_region
          %s272 = ssub.s32 128, 128
          %273 = vsyncadd %s259, %s272
          %s274 = smul.addr %s27, 4
          %s275 = sadd.s32 %s28, %s274
          %s276 = smul.addr %s275, 32
          %s277 = scalar_lea.hbm %s1, %s276
          %s278 = sshll.u32 %s262, 4
          %s279 = int_to_ptr.vmem [resolvable:$true] %s278
          %284 = dma.vmem_to_hbm [thread:$0]  %s279, 128, %s277, %s259, 32, 32, 2
        $region32: #{tpu_custom_call.1} parent=23 // pred_fallthru
          _
        // Predicated region
        $region33: #{tpu_custom_call.1} parent=23 // pred_check
          %p285 = pneg %p111
        $region34: #{tpu_custom_call.1} parent=23 // pred_check_branch
          %287 = sbr.rel (%p285) target = $region36
        $region35: #{tpu_custom_call.1} parent=23 // pred_region
          %s289 = ssub.s32 32, 32
          %290 = vsyncadd %s264, %s289
          %s291 = sadd.s32 %s28, %s27
          %s292 = smul.addr %s291, 32
          %s293 = scalar_lea.hbm %s2, %s292
          %s295 = sshll.u32 %s267, 4
          %s296 = int_to_ptr.vmem [resolvable:$true] %s295
          %298 = dma.vmem_to_hbm [thread:$0]  %s296, 32, %s293, %s264
        $region36: #{tpu_custom_call.1} parent=23 // pred_fallthru
          _
      $region24: #{tpu_custom_call.1} parent=5 // pred_fallthru
        _
      %p299 = scmp.le.s32.totalorder 2, %s18
      // Predicated region
      $region37: #{tpu_custom_call.1} parent=5 // pred_check
        %p300 = pneg %p299
      $region38: #{tpu_custom_call.1} parent=5 // pred_check_branch
        %302 = sbr.rel (%p300) target = $region40
      $region39: #{tpu_custom_call.1} parent=5 // pred_region
        %s303 = ssub.s32 %s18, 2
        // Predicated region
        $region41: #{tpu_custom_call.1} parent=39 // pred_check
          %p304 = pneg %p89
        $region42: #{tpu_custom_call.1} parent=39 // pred_check_branch
          %306 = sbr.rel (%p304) target = $region44
        $region43: #{tpu_custom_call.1} parent=39 // pred_region
          %s307 = sand.u32 %s74, 1
          %s308 = scalar_lea.sflag [#allocation4], %s307
          %s309 = sand.u32 %s74, 1
          %s310 = smul.addr %s309, 8
          %s311 = scalar_lea.vmem [#allocation5], %s310
          %312 = dma.done %s308, 128
        $region44: #{tpu_custom_call.1} parent=39 // pred_fallthru
          _
        // Predicated region
        $region45: #{tpu_custom_call.1} parent=39 // pred_check
          %p313 = pneg %p117
        $region46: #{tpu_custom_call.1} parent=39 // pred_check_branch
          %315 = sbr.rel (%p313) target = $region48
        $region47: #{tpu_custom_call.1} parent=39 // pred_region
          %s316 = sand.u32 %s102, 1
          %s317 = scalar_lea.sflag [#allocation7], %s316
          %s318 = sand.u32 %s102, 1
          %s319 = smul.addr %s318, 2
          %s320 = scalar_lea.vmem [#allocation6], %s319
          %321 = dma.done %s317, 32
        $region48: #{tpu_custom_call.1} parent=39 // pred_fallthru
          _
      $region40: #{tpu_custom_call.1} parent=5 // pred_fallthru
        _
    $region6: #{tpu_custom_call.1} parent=1 // loop_footer
      %s22 = sadd.s32 1, %s18
    $region7: #{tpu_custom_call.1} parent=1 // loop_footer_branch
      %17 = sbr.rel target = $region3
    $region8: #{tpu_custom_call.1} parent=1 // loop_exit
      _
    %322 = vsyncpa [#allocation3], 1
    %s323 = scalar_lea.sflag [#allocation3], 1
    %324 = vsyncpa %s323, 1
    %325 = vsyncpa [#allocation4], 1
    %s326 = scalar_lea.sflag [#allocation4], 1
    %327 = vsyncpa %s326, 1
    %328 = vsyncpa [#allocation7], 1
    %s329 = scalar_lea.sflag [#allocation7], 1
    %330 = vsyncpa %s329, 1

</llo_original>
